<compile_context>
chip_gen: v7x
topology: tpu7x:2x2x1
jax: 0.10.0
libtpu: 0.0.40
codegen_flags: <defaults>
</compile_context>

<pallas_src>
import functools

import jax
import jax.numpy as jnp
from jax.experimental import pallas as pl
from jax.experimental.pallas import tpu as pltpu

IN_FEATURES = 28 * 28          # 784
NUM_CLASSES = 10
LANE = 128
K_PAD = ((IN_FEATURES + LANE - 1) // LANE) * LANE   # 896 = 7 * 128


def _round_up(x, m):
    return ((x + m - 1) // m) * m


def logreg_kernel(x_ref, w_ref, b_ref, o_ref):
    # x_ref: (TILE_B, K_PAD) bf16 | w_ref: (K_PAD, 10) bf16 | b_ref: (1, 10) f32
    x = x_ref[...]
    w = w_ref[...]
    b = b_ref[...]
    # bf16 operands into the MXU, f32 accumulation; everything after is f32.
    logits = jnp.dot(x, w, preferred_element_type=jnp.float32) + b   # (TILE_B, 10)
    m = jnp.max(logits, axis=1, keepdims=True)                       # (TILE_B, 1)
    e = jnp.exp(logits - m)                                          # (TILE_B, 10)
    denom = jnp.sum(e, axis=1, keepdims=True)                        # (TILE_B, 1)
    # approx reciprocal lowers to the otherwise-idle EUP slot.
    o_ref[...] = (e * pl.reciprocal(denom, approx=True)).astype(o_ref.dtype)
    # TODO(synk): N=10 output stores are lane-sparse (vst.msk); padding classes to
    # 128 with -inf bias is a second-order win only, so it is intentionally skipped.


@functools.partial(jax.jit, static_argnames=("tile_b",))
def logistic_regression(x, w, b, *, tile_b=512):
    """softmax(x @ w.T + b, axis=1).

    x: (B, 784) float; w: (10, 784) float (nn.Linear weight); b: (10,) float.
    """
    B = x.shape[0]

    # ---- wrapper-side layout prep (glue, outside the hot kernel) ------------
    # Weight transposed to (K, N), K zero-padded to a 128 multiple, bf16 operands.
    w_t = jnp.pad(jnp.transpose(w), ((0, K_PAD - IN_FEATURES), (0, 0)))
    w_t = w_t.astype(jnp.bfloat16)                                   # (896, 10)
    b2 = jnp.reshape(b, (1, NUM_CLASSES)).astype(jnp.float32)        # (1, 10)

    # Batch tile: multiple of 8 (sublane), capped at tile_b; pad B to a tile multiple.
    tb = min(tile_b, _round_up(B, 8))
    b_pad = _round_up(B, tb)
    x_p = jnp.pad(x.astype(jnp.bfloat16),
                  ((0, b_pad - B), (0, K_PAD - IN_FEATURES)))        # (Bp, 896) bf16

    grid = (b_pad // tb,)

    # VMEM budget: double-buffered x/out tiles + resident weights/bias + headroom.
    vmem_bytes = (
        2 * tb * K_PAD * 2        # x tiles (bf16, double-buffered)
        + 2 * tb * LANE * 4       # out tiles (f32, lane-padded)
        + K_PAD * LANE * 2        # resident weights (lane-padded)
        + 8 * LANE * 4            # resident bias
    )
    vmem_bytes = min(int(vmem_bytes) + (16 << 20), 48 << 20)  # fits v7x 64 MiB/TC

    out = pl.pallas_call(
        logreg_kernel,
        out_shape=jax.ShapeDtypeStruct((b_pad, NUM_CLASSES), jnp.float32),
        grid=grid,
        in_specs=[
            pl.BlockSpec((tb, K_PAD), lambda i: (i, 0)),             # streamed x
            pl.BlockSpec((K_PAD, NUM_CLASSES), lambda i: (0, 0)),    # resident W
            pl.BlockSpec((1, NUM_CLASSES), lambda i: (0, 0)),        # resident b
        ],
        out_specs=pl.BlockSpec((tb, NUM_CLASSES), lambda i: (i, 0)),
        compiler_params=pltpu.CompilerParams(
            dimension_semantics=("parallel",),
            vmem_limit_bytes=vmem_bytes,
        ),
    )(x_p, w_t, b2)

    return out[:B]


if __name__ == "__main__":
    key = jax.random.PRNGKey(0)
    k_x, k_w, k_b = jax.random.split(key, 3)

    B = 8  # small demo batch; the batch grid scales the same kernel to large B
    bound = 1.0 / (IN_FEATURES ** 0.5)
    w = jax.random.uniform(k_w, (NUM_CLASSES, IN_FEATURES), jnp.float32, -bound, bound)
    b = jax.random.uniform(k_b, (NUM_CLASSES,), jnp.float32, -bound, bound)
    x = jax.random.normal(k_x, (B, IN_FEATURES), jnp.float32)

    out = jax.block_until_ready(logistic_regression(x, w, b))
    assert out.shape == (B, NUM_CLASSES)

    # Reference 1: same-precision path (bf16 MXU operands, f32 accumulate/softmax).
    xb = x.astype(jnp.bfloat16)
    wtb = jnp.transpose(w).astype(jnp.bfloat16)
    ref_bf16 = jax.nn.softmax(
        jnp.dot(xb, wtb, preferred_element_type=jnp.float32) + b[None, :], axis=1)
    assert jnp.allclose(out, ref_bf16, atol=5e-3), "mismatch vs bf16-matmul reference"

    # Reference 2: full-f32 PyTorch-equivalent forward (looser tol due to bf16 inputs).
    ref_f32 = jax.nn.softmax(x @ jnp.transpose(w) + b[None, :], axis=1)
    assert jnp.allclose(out, ref_f32, atol=3e-2), "mismatch vs f32 reference"

    # Each row is a probability distribution.
    assert jnp.allclose(jnp.sum(out, axis=1), 1.0, atol=5e-3)

    print("KERNEL_OK")
</pallas_src>

<mosaic_0001>
module attributes {stable_mosaic.version = 11 : i64} {
  func.func @logreg_kernel(%arg0: i32, %arg1: memref<8x896xbf16, #tpu.memory_space<vmem>>, %arg2: memref<896x10xbf16, #tpu.memory_space<vmem>>, %arg3: memref<1x10xf32, #tpu.memory_space<vmem>>, %arg4: memref<8x10xf32, #tpu.memory_space<vmem>>) attributes {dimension_semantics = [#tpu.dimension_semantics<parallel>], iteration_bounds = array<i64: 1>, scalar_prefetch = 0 : i64, scratch_operands = 0 : i64, tpu.core_type = #tpu.core_type<tc>, window_params = [{transform_indices = @transform_0, window_bounds = array<i64: 8, 896>}, {pipeline_mode = #tpu.pipeline_mode<synchronous>, transform_indices = @transform_1, window_bounds = array<i64: 896, 10>}, {pipeline_mode = #tpu.pipeline_mode<synchronous>, transform_indices = @transform_2, window_bounds = array<i64: 1, 10>}, {transform_indices = @transform_3, window_bounds = array<i64: 8, 10>}]} {
    %c0 = arith.constant 0 : index
    %c0_0 = arith.constant 0 : index
    %0 = vector.load %arg1[%c0, %c0_0] : memref<8x896xbf16, #tpu.memory_space<vmem>>, vector<8x896xbf16>
    %c0_1 = arith.constant 0 : index
    %c0_2 = arith.constant 0 : index
    %1 = vector.load %arg2[%c0_1, %c0_2] : memref<896x10xbf16, #tpu.memory_space<vmem>>, vector<896x10xbf16>
    %c0_3 = arith.constant 0 : index
    %c0_4 = arith.constant 0 : index
    %2 = vector.load %arg3[%c0_3, %c0_4] : memref<1x10xf32, #tpu.memory_space<vmem>>, vector<1x10xf32>
    %cst = arith.constant dense<0.000000e+00> : vector<8x10xf32>
    %3 = tpu.matmul %0, %1, %cst {dimension_numbers = #tpu.dot_dimension_numbers<[1], [0], [0], [1], [0, 0, 1, 1], [], []>} : vector<8x896xbf16>, vector<896x10xbf16>, vector<8x10xf32> -> vector<8x10xf32>
    %4 = vector.broadcast %2 : vector<1x10xf32> to vector<8x10xf32>
    %5 = arith.addf %3, %4 : vector<8x10xf32>
    %cst_5 = arith.constant dense<0xFF800000> : vector<8xf32>
    %6 = vector.multi_reduction <maximumf>, %5, %cst_5 [1] : vector<8x10xf32> to vector<8xf32>
    %7 = vector.shape_cast %6 : vector<8xf32> to vector<8x1xf32>
    %8 = vector.broadcast %7 : vector<8x1xf32> to vector<8x10xf32>
    %9 = arith.subf %5, %8 : vector<8x10xf32>
    %10 = math.exp %9 : vector<8x10xf32>
    %cst_6 = arith.constant dense<0.000000e+00> : vector<8xf32>
    %11 = vector.multi_reduction <add>, %10, %cst_6 [1] : vector<8x10xf32> to vector<8xf32>
    %12 = vector.shape_cast %11 : vector<8xf32> to vector<8x1xf32>
    %13 = tpu.reciprocal %12 {approx = true} : vector<8x1xf32> -> vector<8x1xf32>
    %14 = vector.broadcast %13 : vector<8x1xf32> to vector<8x10xf32>
    %15 = arith.mulf %10, %14 : vector<8x10xf32>
    %c0_7 = arith.constant 0 : index
    %c0_8 = arith.constant 0 : index
    %16 = vector.load %arg4[%c0_7, %c0_8] : memref<8x10xf32, #tpu.memory_space<vmem>>, vector<8x10xf32>
    tpu.vector_store %arg4[%c0_7, %c0_8], %15 {strides = array<i32>} : memref<8x10xf32, #tpu.memory_space<vmem>>, vector<8x10xf32>,
    return
  }
  func.func @transform_0(%arg0: i32) -> (i32, i32) {
    %c0_i32 = arith.constant 0 : i32
    %c0_i32_0 = arith.constant 0 : i32
    return %arg0, %c0_i32 : i32, i32
  }
  func.func @transform_1(%arg0: i32) -> (i32, i32) {
    %c0_i32 = arith.constant 0 : i32
    %c0_i32_0 = arith.constant 0 : i32
    %c0_i32_1 = arith.constant 0 : i32
    return %c0_i32, %c0_i32_0 : i32, i32
  }
  func.func @transform_2(%arg0: i32) -> (i32, i32) {
    %c0_i32 = arith.constant 0 : i32
    %c0_i32_0 = arith.constant 0 : i32
    %c0_i32_1 = arith.constant 0 : i32
    return %c0_i32, %c0_i32_0 : i32, i32
  }
  func.func @transform_3(%arg0: i32) -> (i32, i32) {
    %c0_i32 = arith.constant 0 : i32
    %c0_i32_0 = arith.constant 0 : i32
    return %arg0, %c0_i32 : i32, i32
  }
}

</mosaic_0001>

<llo_original>
// kernel: logistic_regression.1
$region0: #{logistic_regression.1}
  #allocation0 [shape = 'u32[]', space=smem, size = 0x4, offset = 0x4, fixed_abs, tag = 'smem constant byte address 0x4 - core index']
  #allocation1 [shape = 'u32[144,128]{1,0:T(1,128)}', space=vmem, size = 0x12000, scoped, tag = 'internal scratch']
  %s0 = inlined_call_operand.vmem [shape: bf16[8,896], index: 0, kind: input, shape index: {}]
  %s1 = inlined_call_operand.vmem [shape: bf16[896,10], index: 1, kind: input, shape index: {}]
  %s2 = inlined_call_operand.vmem [shape: f32[1,10], index: 2, kind: input, shape index: {}]
  %s3 = inlined_call_operand.hbm [shape: f32[8,10], index: 3, kind: output, shape index: {}]
  %s4 = sld [smem:[#allocation0]]
  $region22: #{logistic_regression.1} parent=0
    _
  %s6 = ssub.s32 1, %s4
  %s7 = scalar_select 0, %s6, %s4
  $region1: #{logistic_regression.1} parent=0
    #allocation2 [shape = 'u8[4096]{0}', space=vmem, size = 0x1000, scoped, tag = 'output window, operand 0, single buffered']
    #allocation3 [shape = 's32[1]{0}', space=sflag, size = 0x4, scoped, tag = 'scoped memory for logistic_regression.1']
    %8 = vsyncpa [#allocation3], 0
    // Predicated region
    $region2: #{logistic_regression.1} parent=1 // pred_check
      _
    $region3: #{logistic_regression.1} parent=1 // pred_check_branch
      %10 = sbr.rel (0) target = $region5
    $region4: #{logistic_regression.1} parent=1 // pred_region
      _
    $region5: #{logistic_regression.1} parent=1 // pred_fallthru
      _
    // Predicated region
    $region6: #{logistic_regression.1} parent=1 // pred_check
      _
    $region7: #{logistic_regression.1} parent=1 // pred_check_branch
      %12 = sbr.rel (0) target = $region9
    $region8: #{logistic_regression.1} parent=1 // pred_region
      _
    $region9: #{logistic_regression.1} parent=1 // pred_fallthru
      _
    // Predicated region
    $region10: #{logistic_regression.1} parent=1 // pred_check
      _
    $region11: #{logistic_regression.1} parent=1 // pred_check_branch
      %14 = sbr.rel (0) target = $region13
    $region12: #{logistic_regression.1} parent=1 // pred_region
      _
    $region13: #{logistic_regression.1} parent=1 // pred_fallthru
      _
    %v16 = vld [vmem:[%s0] sm:$0xff]
    %v17 = vld [vmem:[%s0 + $0x8] sm:$0xff]
    %v18 = vld [vmem:[%s0 + $0x10] sm:$0xff]
    %v19 = vld [vmem:[%s0 + $0x18] sm:$0xf]
    %v20 = vld [vmem:[%s1] sm:$0xf]
    %v21 = vld [vmem:[%s1 + $0x4] sm:$0xf]
    %v22 = vld [vmem:[%s1 + $0x8] sm:$0xf]
    %v23 = vld [vmem:[%s1 + $0xc] sm:$0xf]
    %v24 = vld [vmem:[%s1 + $0x10] sm:$0xf]
    %v25 = vld [vmem:[%s1 + $0x14] sm:$0xf]
    %v26 = vld [vmem:[%s1 + $0x18] sm:$0xf]
    %v27 = vld [vmem:[%s1 + $0x1c] sm:$0xf]
    %v28 = vld [vmem:[%s1 + $0x20] sm:$0xf]
    %v29 = vld [vmem:[%s1 + $0x24] sm:$0xf]
    %v30 = vld [vmem:[%s1 + $0x28] sm:$0xf]
    %v31 = vld [vmem:[%s1 + $0x2c] sm:$0xf]
    %v32 = vld [vmem:[%s1 + $0x30] sm:$0xf]
    %v33 = vld [vmem:[%s1 + $0x34] sm:$0xf]
    %v34 = vld [vmem:[%s1 + $0x38] sm:$0xf]
    %v35 = vld [vmem:[%s1 + $0x3c] sm:$0xf]
    %v36 = vld [vmem:[%s1 + $0x40] sm:$0xf]
    %v37 = vld [vmem:[%s1 + $0x44] sm:$0xf]
    %v38 = vld [vmem:[%s1 + $0x48] sm:$0xf]
    %v39 = vld [vmem:[%s1 + $0x4c] sm:$0xf]
    %v40 = vld [vmem:[%s1 + $0x50] sm:$0xf]
    %v41 = vld [vmem:[%s1 + $0x54] sm:$0xf]
    %v42 = vld [vmem:[%s1 + $0x58] sm:$0xf]
    %v43 = vld [vmem:[%s1 + $0x5c] sm:$0xf]
    %v44 = vld [vmem:[%s1 + $0x60] sm:$0xf]
    %v45 = vld [vmem:[%s1 + $0x64] sm:$0xf]
    %v46 = vld [vmem:[%s1 + $0x68] sm:$0xf]
    %v47 = vld [vmem:[%s1 + $0x6c] sm:$0xf]
    %v48 = vld [vmem:[%s1 + $0x70] sm:$0xf]
    %v49 = vld [vmem:[%s1 + $0x74] sm:$0xf]
    %v50 = vld [vmem:[%s1 + $0x78] sm:$0xf]
    %v51 = vld [vmem:[%s1 + $0x7c] sm:$0xf]
    %v52 = vld [vmem:[%s1 + $0x80] sm:$0xf]
    %v53 = vld [vmem:[%s1 + $0x84] sm:$0xf]
    %v54 = vld [vmem:[%s1 + $0x88] sm:$0xf]
    %v55 = vld [vmem:[%s1 + $0x8c] sm:$0xf]
    %v56 = vld [vmem:[%s1 + $0x90] sm:$0xf]
    %v57 = vld [vmem:[%s1 + $0x94] sm:$0xf]
    %v58 = vld [vmem:[%s1 + $0x98] sm:$0xf]
    %v59 = vld [vmem:[%s1 + $0x9c] sm:$0xf]
    %v60 = vld [vmem:[%s1 + $0xa0] sm:$0xf]
    %v61 = vld [vmem:[%s1 + $0xa4] sm:$0xf]
    %v62 = vld [vmem:[%s1 + $0xa8] sm:$0xf]
    %v63 = vld [vmem:[%s1 + $0xac] sm:$0xf]
    %v64 = vld [vmem:[%s1 + $0xb0] sm:$0xf]
    %v65 = vld [vmem:[%s1 + $0xb4] sm:$0xf]
    %v66 = vld [vmem:[%s1 + $0xb8] sm:$0xf]
    %v67 = vld [vmem:[%s1 + $0xbc] sm:$0xf]
    %v68 = vld [vmem:[%s1 + $0xc0] sm:$0xf]
    %v69 = vld [vmem:[%s1 + $0xc4] sm:$0xf]
    %v70 = vld [vmem:[%s1 + $0xc8] sm:$0xf]
    %v71 = vld [vmem:[%s1 + $0xcc] sm:$0xf]
    %v72 = vld [vmem:[%s1 + $0xd0] sm:$0xf]
    %v73 = vld [vmem:[%s1 + $0xd4] sm:$0xf]
    %v74 = vld [vmem:[%s1 + $0xd8] sm:$0xf]
    %v75 = vld [vmem:[%s1 + $0xdc] sm:$0xf]
    %v76 = vld [vmem:[%s1 + $0xe0] sm:$0xf]
    %v77 = vld [vmem:[%s1 + $0xe4] sm:$0xf]
    %v78 = vld [vmem:[%s1 + $0xe8] sm:$0xf]
    %v79 = vld [vmem:[%s1 + $0xec] sm:$0xf]
    %v80 = vld [vmem:[%s1 + $0xf0] sm:$0xf]
    %v81 = vld [vmem:[%s1 + $0xf4] sm:$0xf]
    %v82 = vld [vmem:[%s1 + $0xf8] sm:$0xf]
    %v83 = vld [vmem:[%s1 + $0xfc] sm:$0xf]
    %v84 = vld [vmem:[%s1 + $0x100] sm:$0xf]
    %v85 = vld [vmem:[%s1 + $0x104] sm:$0xf]
    %v86 = vld [vmem:[%s1 + $0x108] sm:$0xf]
    %v87 = vld [vmem:[%s1 + $0x10c] sm:$0xf]
    %v88 = vld [vmem:[%s1 + $0x110] sm:$0xf]
    %v89 = vld [vmem:[%s1 + $0x114] sm:$0xf]
    %v90 = vld [vmem:[%s1 + $0x118] sm:$0xf]
    %v91 = vld [vmem:[%s1 + $0x11c] sm:$0xf]
    %v92 = vld [vmem:[%s1 + $0x120] sm:$0xf]
    %v93 = vld [vmem:[%s1 + $0x124] sm:$0xf]
    %v94 = vld [vmem:[%s1 + $0x128] sm:$0xf]
    %v95 = vld [vmem:[%s1 + $0x12c] sm:$0xf]
    %v96 = vld [vmem:[%s1 + $0x130] sm:$0xf]
    %v97 = vld [vmem:[%s1 + $0x134] sm:$0xf]
    %v98 = vld [vmem:[%s1 + $0x138] sm:$0xf]
    %v99 = vld [vmem:[%s1 + $0x13c] sm:$0xf]
    %v100 = vld [vmem:[%s1 + $0x140] sm:$0xf]
    %v101 = vld [vmem:[%s1 + $0x144] sm:$0xf]
    %v102 = vld [vmem:[%s1 + $0x148] sm:$0xf]
    %v103 = vld [vmem:[%s1 + $0x14c] sm:$0xf]
    %v104 = vld [vmem:[%s1 + $0x150] sm:$0xf]
    %v105 = vld [vmem:[%s1 + $0x154] sm:$0xf]
    %v106 = vld [vmem:[%s1 + $0x158] sm:$0xf]
    %v107 = vld [vmem:[%s1 + $0x15c] sm:$0xf]
    %v108 = vld [vmem:[%s1 + $0x160] sm:$0xf]
    %v109 = vld [vmem:[%s1 + $0x164] sm:$0xf]
    %v110 = vld [vmem:[%s1 + $0x168] sm:$0xf]
    %v111 = vld [vmem:[%s1 + $0x16c] sm:$0xf]
    %v112 = vld [vmem:[%s1 + $0x170] sm:$0xf]
    %v113 = vld [vmem:[%s1 + $0x174] sm:$0xf]
    %v114 = vld [vmem:[%s1 + $0x178] sm:$0xf]
    %v115 = vld [vmem:[%s1 + $0x17c] sm:$0xf]
    %v116 = vld [vmem:[%s1 + $0x180] sm:$0xf]
    %v117 = vld [vmem:[%s1 + $0x184] sm:$0xf]
    %v118 = vld [vmem:[%s1 + $0x188] sm:$0xf]
    %v119 = vld [vmem:[%s1 + $0x18c] sm:$0xf]
    %v120 = vld [vmem:[%s1 + $0x190] sm:$0xf]
    %v121 = vld [vmem:[%s1 + $0x194] sm:$0xf]
    %v122 = vld [vmem:[%s1 + $0x198] sm:$0xf]
    %v123 = vld [vmem:[%s1 + $0x19c] sm:$0xf]
    %v124 = vld [vmem:[%s1 + $0x1a0] sm:$0xf]
    %v125 = vld [vmem:[%s1 + $0x1a4] sm:$0xf]
    %v126 = vld [vmem:[%s1 + $0x1a8] sm:$0xf]
    %v127 = vld [vmem:[%s1 + $0x1ac] sm:$0xf]
    %v128 = vld [vmem:[%s1 + $0x1b0] sm:$0xf]
    %v129 = vld [vmem:[%s1 + $0x1b4] sm:$0xf]
    %v130 = vld [vmem:[%s1 + $0x1b8] sm:$0xf]
    %v131 = vld [vmem:[%s1 + $0x1bc] sm:$0xf]
    %v132 = vld [vmem:[%s2] sm:$0x1]
    %v134 = vlaneseq
    %v135 = vshrl.u32 %v134, 7
    %v136 = vsub.s32 0, %v135
    %v137 = vrot.slane %v132, %v136
    %v143 = vunpack.c.l.b16 %v16
    %v144 = vunpack.c.h.b16 %v16
    %v145 = vunpack.c.l.b16 %v17
    %v146 = vunpack.c.h.b16 %v17
    %v147 = vunpack.c.l.b16 %v18
    %v148 = vunpack.c.h.b16 %v18
    %v149 = vunpack.c.l.b16 %v19
    %v150 = vpack.c.b16 %v143, %v143
    %v151 = vpack.c.b16 %v144, %v144
    %v152 = vpack.c.b16 %v145, %v145
    %v153 = vpack.c.b16 %v146, %v146
    %v154 = vpack.c.b16 %v147, %v147
    %v155 = vpack.c.b16 %v148, %v148
    %v156 = vpack.c.b16 %v149, %v149
    %v276 = vunpack.c.l.b16 %v20
    %v277 = vunpack.c.l.b16 %v21
    %v278 = vunpack.c.l.b16 %v22
    %v279 = vunpack.c.l.b16 %v23
    %v280 = vunpack.c.l.b16 %v24
    %v281 = vunpack.c.l.b16 %v25
    %v282 = vunpack.c.l.b16 %v26
    %v283 = vunpack.c.l.b16 %v27
    %v284 = vunpack.c.l.b16 %v28
    %v285 = vunpack.c.l.b16 %v29
    %v286 = vunpack.c.l.b16 %v30
    %v287 = vunpack.c.l.b16 %v31
    %v288 = vunpack.c.l.b16 %v32
    %v289 = vunpack.c.l.b16 %v33
    %v290 = vunpack.c.l.b16 %v34
    %v291 = vunpack.c.l.b16 %v35
    %v292 = vunpack.c.l.b16 %v36
    %v293 = vunpack.c.l.b16 %v37
    %v294 = vunpack.c.l.b16 %v38
    %v295 = vunpack.c.l.b16 %v39
    %v296 = vunpack.c.l.b16 %v40
    %v297 = vunpack.c.l.b16 %v41
    %v298 = vunpack.c.l.b16 %v42
    %v299 = vunpack.c.l.b16 %v43
    %v300 = vunpack.c.l.b16 %v44
    %v301 = vunpack.c.l.b16 %v45
    %v302 = vunpack.c.l.b16 %v46
    %v303 = vunpack.c.l.b16 %v47
    %v304 = vunpack.c.l.b16 %v48
    %v305 = vunpack.c.l.b16 %v49
    %v306 = vunpack.c.l.b16 %v50
    %v307 = vunpack.c.l.b16 %v51
    %v308 = vunpack.c.l.b16 %v52
    %v309 = vunpack.c.l.b16 %v53
    %v310 = vunpack.c.l.b16 %v54
    %v311 = vunpack.c.l.b16 %v55
    %v312 = vunpack.c.l.b16 %v56
    %v313 = vunpack.c.l.b16 %v57
    %v314 = vunpack.c.l.b16 %v58
    %v315 = vunpack.c.l.b16 %v59
    %v316 = vunpack.c.l.b16 %v60
    %v317 = vunpack.c.l.b16 %v61
    %v318 = vunpack.c.l.b16 %v62
    %v319 = vunpack.c.l.b16 %v63
    %v320 = vunpack.c.l.b16 %v64
    %v321 = vunpack.c.l.b16 %v65
    %v322 = vunpack.c.l.b16 %v66
    %v323 = vunpack.c.l.b16 %v67
    %v324 = vunpack.c.l.b16 %v68
    %v325 = vunpack.c.l.b16 %v69
    %v326 = vunpack.c.l.b16 %v70
    %v327 = vunpack.c.l.b16 %v71
    %v328 = vunpack.c.l.b16 %v72
    %v329 = vunpack.c.l.b16 %v73
    %v330 = vunpack.c.l.b16 %v74
    %v331 = vunpack.c.l.b16 %v75
    %v332 = vunpack.c.l.b16 %v76
    %v333 = vunpack.c.l.b16 %v77
    %v334 = vunpack.c.l.b16 %v78
    %v335 = vunpack.c.l.b16 %v79
    %v336 = vunpack.c.l.b16 %v80
    %v337 = vunpack.c.l.b16 %v81
    %v338 = vunpack.c.l.b16 %v82
    %v339 = vunpack.c.l.b16 %v83
    %v340 = vunpack.c.l.b16 %v84
    %v341 = vunpack.c.l.b16 %v85
    %v342 = vunpack.c.l.b16 %v86
    %v343 = vunpack.c.l.b16 %v87
    %v344 = vunpack.c.l.b16 %v88
    %v345 = vunpack.c.l.b16 %v89
    %v346 = vunpack.c.l.b16 %v90
    %v347 = vunpack.c.l.b16 %v91
    %v348 = vunpack.c.l.b16 %v92
    %v349 = vunpack.c.l.b16 %v93
    %v350 = vunpack.c.l.b16 %v94
    %v351 = vunpack.c.l.b16 %v95
    %v352 = vunpack.c.l.b16 %v96
    %v353 = vunpack.c.l.b16 %v97
    %v354 = vunpack.c.l.b16 %v98
    %v355 = vunpack.c.l.b16 %v99
    %v356 = vunpack.c.l.b16 %v100
    %v357 = vunpack.c.l.b16 %v101
    %v358 = vunpack.c.l.b16 %v102
    %v359 = vunpack.c.l.b16 %v103
    %v360 = vunpack.c.l.b16 %v104
    %v361 = vunpack.c.l.b16 %v105
    %v362 = vunpack.c.l.b16 %v106
    %v363 = vunpack.c.l.b16 %v107
    %v364 = vunpack.c.l.b16 %v108
    %v365 = vunpack.c.l.b16 %v109
    %v366 = vunpack.c.l.b16 %v110
    %v367 = vunpack.c.l.b16 %v111
    %v368 = vunpack.c.l.b16 %v112
    %v369 = vunpack.c.l.b16 %v113
    %v370 = vunpack.c.l.b16 %v114
    %v371 = vunpack.c.l.b16 %v115
    %v372 = vunpack.c.l.b16 %v116
    %v373 = vunpack.c.l.b16 %v117
    %v374 = vunpack.c.l.b16 %v118
    %v375 = vunpack.c.l.b16 %v119
    %v376 = vunpack.c.l.b16 %v120
    %v377 = vunpack.c.l.b16 %v121
    %v378 = vunpack.c.l.b16 %v122
    %v379 = vunpack.c.l.b16 %v123
    %v380 = vunpack.c.l.b16 %v124
    %v381 = vunpack.c.l.b16 %v125
    %v382 = vunpack.c.l.b16 %v126
    %v383 = vunpack.c.l.b16 %v127
    %v384 = vunpack.c.l.b16 %v128
    %v385 = vunpack.c.l.b16 %v129
    %v386 = vunpack.c.l.b16 %v130
    %v387 = vunpack.c.l.b16 %v131
    %v388 = vpack.c.b16 %v277, %v276
    %v389 = vpack.c.b16 %v279, %v278
    %v390 = vpack.c.b16 %v281, %v280
    %v391 = vpack.c.b16 %v283, %v282
    %v392 = vpack.c.b16 %v285, %v284
    %v393 = vpack.c.b16 %v287, %v286
    %v394 = vpack.c.b16 %v289, %v288
    %v395 = vpack.c.b16 %v291, %v290
    %v396 = vpack.c.b16 %v293, %v292
    %v397 = vpack.c.b16 %v295, %v294
    %v398 = vpack.c.b16 %v297, %v296
    %v399 = vpack.c.b16 %v299, %v298
    %v400 = vpack.c.b16 %v301, %v300
    %v401 = vpack.c.b16 %v303, %v302
    %v402 = vpack.c.b16 %v305, %v304
    %v403 = vpack.c.b16 %v307, %v306
    %v404 = vpack.c.b16 %v309, %v308
    %v405 = vpack.c.b16 %v311, %v310
    %v406 = vpack.c.b16 %v313, %v312
    %v407 = vpack.c.b16 %v315, %v314
    %v408 = vpack.c.b16 %v317, %v316
    %v409 = vpack.c.b16 %v319, %v318
    %v410 = vpack.c.b16 %v321, %v320
    %v411 = vpack.c.b16 %v323, %v322
    %v412 = vpack.c.b16 %v325, %v324
    %v413 = vpack.c.b16 %v327, %v326
    %v414 = vpack.c.b16 %v329, %v328
    %v415 = vpack.c.b16 %v331, %v330
    %v416 = vpack.c.b16 %v333, %v332
    %v417 = vpack.c.b16 %v335, %v334
    %v418 = vpack.c.b16 %v337, %v336
    %v419 = vpack.c.b16 %v339, %v338
    %v420 = vpack.c.b16 %v341, %v340
    %v421 = vpack.c.b16 %v343, %v342
    %v422 = vpack.c.b16 %v345, %v344
    %v423 = vpack.c.b16 %v347, %v346
    %v424 = vpack.c.b16 %v349, %v348
    %v425 = vpack.c.b16 %v351, %v350
    %v426 = vpack.c.b16 %v353, %v352
    %v427 = vpack.c.b16 %v355, %v354
    %v428 = vpack.c.b16 %v357, %v356
    %v429 = vpack.c.b16 %v359, %v358
    %v430 = vpack.c.b16 %v361, %v360
    %v431 = vpack.c.b16 %v363, %v362
    %v432 = vpack.c.b16 %v365, %v364
    %v433 = vpack.c.b16 %v367, %v366
    %v434 = vpack.c.b16 %v369, %v368
    %v435 = vpack.c.b16 %v371, %v370
    %v436 = vpack.c.b16 %v373, %v372
    %v437 = vpack.c.b16 %v375, %v374
    %v438 = vpack.c.b16 %v377, %v376
    %v439 = vpack.c.b16 %v379, %v378
    %v440 = vpack.c.b16 %v381, %v380
    %v441 = vpack.c.b16 %v383, %v382
    %v442 = vpack.c.b16 %v385, %v384
    %v443 = vpack.c.b16 %v387, %v386
    %500 = vmatprep.subr.bf16.mxu0 0
    %501 = vmatpush1.bf16.msra.mxu0 %v388
    %502 = vmatprep.subr.bf16.mxu0 0
    %503 = vmatpush1.bf16.msra.mxu0 %v389
    %504 = vmatprep.subr.bf16.mxu0 0
    %505 = vmatpush1.bf16.msra.mxu0 %v390
    %506 = vmatprep.subr.bf16.mxu0 0
    %507 = vmatpush1.bf16.msra.mxu0 %v391
    %508 = vmatprep.subr.bf16.mxu0 0
    %509 = vmatpush1.bf16.msra.mxu0 %v392
    %510 = vmatprep.subr.bf16.mxu0 0
    %511 = vmatpush1.bf16.msra.mxu0 %v393
    %512 = vmatprep.subr.bf16.mxu0 0
    %513 = vmatpush1.bf16.msra.mxu0 %v394
    %514 = vmatprep.subr.bf16.mxu0 0
    %515 = vmatpush1.bf16.msra.mxu0 %v395
    %516 = vmatprep.subr.bf16.mxu0 0
    %517 = vmatpush1.bf16.msra.mxu0 %v396
    %518 = vmatprep.subr.bf16.mxu0 0
    %519 = vmatpush1.bf16.msra.mxu0 %v397
    %520 = vmatprep.subr.bf16.mxu0 0
    %521 = vmatpush1.bf16.msra.mxu0 %v398
    %522 = vmatprep.subr.bf16.mxu0 0
    %523 = vmatpush1.bf16.msra.mxu0 %v399
    %524 = vmatprep.subr.bf16.mxu0 0
    %525 = vmatpush1.bf16.msra.mxu0 %v400
    %526 = vmatprep.subr.bf16.mxu0 0
    %527 = vmatpush1.bf16.msra.mxu0 %v401
    %528 = vmatprep.subr.bf16.mxu0 0
    %529 = vmatpush1.bf16.msra.mxu0 %v402
    %530 = vmatprep.subr.bf16.mxu0 0
    %531 = vmatpush1.bf16.msra.mxu0 %v403
    %532 = vmatprep.mubr.bf16.mxu0 %v151
    %533 = vmatmul.mubr.bf16.gmra.mrb[0].mxu0 %v150
    %v534 = vpop.f32.mrb[0].mxu0
    %v535 = vadd.f32 %v137, %v534
    %v536 = vpop.f32.mrb[0].mxu0
    %v537 = vpop.f32.mrb[0].mxu0
    %v538 = vpop.f32.mrb[0].mxu0
    %539 = vdwg.mxu0
    %540 = vmatprep.subr.bf16.mxu0 0
    %541 = vmatpush1.bf16.msra.mxu0 %v404
    %542 = vmatprep.subr.bf16.mxu0 0
    %543 = vmatpush1.bf16.msra.mxu0 %v405
    %544 = vmatprep.subr.bf16.mxu0 0
    %545 = vmatpush1.bf16.msra.mxu0 %v406
    %546 = vmatprep.subr.bf16.mxu0 0
    %547 = vmatpush1.bf16.msra.mxu0 %v407
    %548 = vmatprep.subr.bf16.mxu0 0
    %549 = vmatpush1.bf16.msra.mxu0 %v408
    %550 = vmatprep.subr.bf16.mxu0 0
    %551 = vmatpush1.bf16.msra.mxu0 %v409
    %552 = vmatprep.subr.bf16.mxu0 0
    %553 = vmatpush1.bf16.msra.mxu0 %v410
    %554 = vmatprep.subr.bf16.mxu0 0
    %555 = vmatpush1.bf16.msra.mxu0 %v411
    %556 = vmatprep.subr.bf16.mxu0 0
    %557 = vmatpush1.bf16.msra.mxu0 %v412
    %558 = vmatprep.subr.bf16.mxu0 0
    %559 = vmatpush1.bf16.msra.mxu0 %v413
    %560 = vmatprep.subr.bf16.mxu0 0
    %561 = vmatpush1.bf16.msra.mxu0 %v414
    %562 = vmatprep.subr.bf16.mxu0 0
    %563 = vmatpush1.bf16.msra.mxu0 %v415
    %564 = vmatprep.subr.bf16.mxu0 0
    %565 = vmatpush1.bf16.msra.mxu0 %v416
    %566 = vmatprep.subr.bf16.mxu0 0
    %567 = vmatpush1.bf16.msra.mxu0 %v417
    %568 = vmatprep.subr.bf16.mxu0 0
    %569 = vmatpush1.bf16.msra.mxu0 %v418
    %570 = vmatprep.subr.bf16.mxu0 0
    %571 = vmatpush1.bf16.msra.mxu0 %v419
    %572 = vmatprep.mubr.bf16.mxu0 %v153
    %573 = vmatmul.mubr.bf16.gmra.mrb[0].mxu0 %v152
    %v574 = vpop.f32.mrb[0].mxu0
    %v575 = vadd.f32 %v535, %v574
    %v576 = vpop.f32.mrb[0].mxu0
    %v577 = vpop.f32.mrb[0].mxu0
    %v578 = vpop.f32.mrb[0].mxu0
    %579 = vdwg.mxu0
    %580 = vmatprep.subr.bf16.mxu0 0
    %581 = vmatpush1.bf16.msra.mxu0 %v420
    %582 = vmatprep.subr.bf16.mxu0 0
    %583 = vmatpush1.bf16.msra.mxu0 %v421
    %584 = vmatprep.subr.bf16.mxu0 0
    %585 = vmatpush1.bf16.msra.mxu0 %v422
    %586 = vmatprep.subr.bf16.mxu0 0
    %587 = vmatpush1.bf16.msra.mxu0 %v423
    %588 = vmatprep.subr.bf16.mxu0 0
    %589 = vmatpush1.bf16.msra.mxu0 %v424
    %590 = vmatprep.subr.bf16.mxu0 0
    %591 = vmatpush1.bf16.msra.mxu0 %v425
    %592 = vmatprep.subr.bf16.mxu0 0
    %593 = vmatpush1.bf16.msra.mxu0 %v426
    %594 = vmatprep.subr.bf16.mxu0 0
    %595 = vmatpush1.bf16.msra.mxu0 %v427
    %596 = vmatprep.subr.bf16.mxu0 0
    %597 = vmatpush1.bf16.msra.mxu0 %v428
    %598 = vmatprep.subr.bf16.mxu0 0
    %599 = vmatpush1.bf16.msra.mxu0 %v429
    %600 = vmatprep.subr.bf16.mxu0 0
    %601 = vmatpush1.bf16.msra.mxu0 %v430
    %602 = vmatprep.subr.bf16.mxu0 0
    %603 = vmatpush1.bf16.msra.mxu0 %v431
    %604 = vmatprep.subr.bf16.mxu0 0
    %605 = vmatpush1.bf16.msra.mxu0 %v432
    %606 = vmatprep.subr.bf16.mxu0 0
    %607 = vmatpush1.bf16.msra.mxu0 %v433
    %608 = vmatprep.subr.bf16.mxu0 0
    %609 = vmatpush1.bf16.msra.mxu0 %v434
    %610 = vmatprep.subr.bf16.mxu0 0
    %611 = vmatpush1.bf16.msra.mxu0 %v435
    %612 = vmatprep.mubr.bf16.mxu0 %v155
    %613 = vmatmul.mubr.bf16.gmra.mrb[0].mxu0 %v154
    %v614 = vpop.f32.mrb[0].mxu0
    %v615 = vadd.f32 %v575, %v614
    %v616 = vpop.f32.mrb[0].mxu0
    %v617 = vpop.f32.mrb[0].mxu0
    %v618 = vpop.f32.mrb[0].mxu0
    %619 = vdwg.mxu0
    %620 = vmatprep.subr.bf16.mxu0 0
    %621 = vmatpush1.bf16.msra.mxu0 %v436
    %622 = vmatprep.subr.bf16.mxu0 0
    %623 = vmatpush1.bf16.msra.mxu0 %v437
    %624 = vmatprep.subr.bf16.mxu0 0
    %625 = vmatpush1.bf16.msra.mxu0 %v438
    %626 = vmatprep.subr.bf16.mxu0 0
    %627 = vmatpush1.bf16.msra.mxu0 %v439
    %628 = vmatprep.subr.bf16.mxu0 0
    %629 = vmatpush1.bf16.msra.mxu0 %v440
    %630 = vmatprep.subr.bf16.mxu0 0
    %631 = vmatpush1.bf16.msra.mxu0 %v441
    %632 = vmatprep.subr.bf16.mxu0 0
    %633 = vmatpush1.bf16.msra.mxu0 %v442
    %634 = vmatprep.subr.bf16.mxu0 0
    %635 = vmatpush1.bf16.msra.mxu0 %v443
    %636 = vmatprep.subr.bf16.mxu0 0
    %637 = vmatpush1.bf16.msra.mxu0 0
    %638 = vmatprep.subr.bf16.mxu0 0
    %639 = vmatpush1.bf16.msra.mxu0 0
    %640 = vmatprep.subr.bf16.mxu0 0
    %641 = vmatpush1.bf16.msra.mxu0 0
    %642 = vmatprep.subr.bf16.mxu0 0
    %643 = vmatpush1.bf16.msra.mxu0 0
    %644 = vmatprep.subr.bf16.mxu0 0
    %645 = vmatpush1.bf16.msra.mxu0 0
    %646 = vmatprep.subr.bf16.mxu0 0
    %647 = vmatpush1.bf16.msra.mxu0 0
    %648 = vmatprep.subr.bf16.mxu0 0
    %649 = vmatpush1.bf16.msra.mxu0 0
    %650 = vmatprep.subr.bf16.mxu0 0
    %651 = vmatpush1.bf16.msra.mxu0 0
    %652 = vmatprep.mubr.bf16.mxu0 0
    %653 = vmatmul.mubr.bf16.gmra.mrb[0].mxu0 %v156
    %v654 = vpop.f32.mrb[0].mxu0
    %v655 = vadd.f32 %v615, %v654
    %v656 = vpop.f32.mrb[0].mxu0
    %v657 = vpop.f32.mrb[0].mxu0
    %v658 = vpop.f32.mrb[0].mxu0
    %659 = vdwg.mxu0
    %vm660 = vcmask 80896
    %v661 = vsel %vm660, %v655, -inf
    %662 = vmax.xlane.f32.xlu0 %v661
    %v663 = vpop.xlane.xlu0 %662
    %v664 = vsub.f32 %v655, %v663
    %v665 = vmul.f32 %v664, 1.442695
    %v666 = vpow.pop %v665
    %v667 = vsel %vm660, %v666, 0.0
    %668 = vadd.xlane.f32.xlu0 %v667
    %v669 = vpop.xlane.xlu0 %668
    %v670 = vrcp.pop %v669
    %v671 = vmul.f32 %v666, %v670
    %672 = vst.msk [vmem:[#allocation2] sm:$0xff] %vm660, %v671
    // Predicated region
    $region14: #{logistic_regression.1} parent=1 // pred_check
      _
    $region15: #{logistic_regression.1} parent=1 // pred_check_branch
      %674 = sbr.rel (0) target = $region17
    $region16: #{logistic_regression.1} parent=1 // pred_region
      %s676 = ssub.s32 128, 128
      %677 = vsyncadd [#allocation3], %s676
      %s679 = sshll.u32 [#allocation2], 4
      %s680 = int_to_ptr.vmem [resolvable:$true] %s679
      %682 = dma.vmem_to_hbm [thread:$0]  %s680, 128, %s3, [#allocation3]
    $region17: #{logistic_regression.1} parent=1 // pred_fallthru
      _
    // Predicated region
    $region18: #{logistic_regression.1} parent=1 // pred_check
      _
    $region19: #{logistic_regression.1} parent=1 // pred_check_branch
      %684 = sbr.rel (0) target = $region21
    $region20: #{logistic_regression.1} parent=1 // pred_region
      %685 = dma.done [#allocation3], 128
    $region21: #{logistic_regression.1} parent=1 // pred_fallthru
      _
    %686 = vsyncpa [#allocation3], 1

</llo_original>
